<compile_context>
chip_gen: v7x
topology: tpu7x:2x2x1
jax: 0.10.0
libtpu: 0.0.40
codegen_flags: <defaults>
</compile_context>

<pallas_src>
import jax
import jax.numpy as jnp
from jax.experimental import pallas as pl
from jax.experimental.pallas import tpu as pltpu


def kan_expert_kernel(x_ref, s_ref, phi_b_ref, psi_wt_ref, psi_b_ref, o_ref):
    x = x_ref[...].astype(jnp.float32)                               # (tm, I)

    # phi stage: concat[b, i*H+h] = x[b, i] * phi_w[i, h] + phi_b[i, h]
    # realized as a single MXU matmul with the pre-built scatter matrix S (I, I*H).
    feat = jnp.dot(x, s_ref[...], preferred_element_type=jnp.float32)
    feat = feat + phi_b_ref[...]                                     # (tm, I*H)

    # psi stage: weight already transposed to (I*H, O) in the wrapper (no in-kernel .T).
    y = jnp.dot(feat, psi_wt_ref[...], preferred_element_type=jnp.float32)
    y = y + psi_b_ref[...]                                           # (tm, O)

    o_ref[...] = y.astype(o_ref.dtype)


def kan_expert(x, params, *, tm=512):
    """x: (B, input_dim) f32. params: phi_w (I,H), phi_b (I,H), psi_w (O, I*H), psi_b (O,)."""
    B, I = x.shape
    H = params["phi_w"].shape[1]
    O = params["psi_w"].shape[0]
    IH = I * H

    # ---- one-time weight composition in plain JAX (outside the hot loop) ----
    # S[i, i*H + h] = phi_w[i, h]  (exact: each feat element is one multiply + zeros)
    S = (jnp.eye(I, dtype=jnp.float32)[:, :, None]
         * params["phi_w"].astype(jnp.float32)[None, :, :]).reshape(I, IH)
    phi_b_flat = params["phi_b"].astype(jnp.float32).reshape(1, IH)
    psi_w_t = params["psi_w"].astype(jnp.float32).T                  # (IH, O), pre-transposed
    psi_b = params["psi_b"].astype(jnp.float32).reshape(1, O)

    # ---- row tiling: large sublane-aligned tiles, cdiv grid (no dropped tail rows) ----
    tm = max(8, (int(tm) // 8) * 8)
    Mp = ((B + 7) // 8) * 8                    # pad rows up to a sublane multiple
    x_p = x if Mp == B else jnp.pad(x, ((0, Mp - B), (0, 0)))
    tm_eff = min(tm, Mp)                       # both multiples of 8
    grid = (pl.cdiv(Mp, tm_eff),)

    out = pl.pallas_call(
        kan_expert_kernel,
        out_shape=jax.ShapeDtypeStruct((Mp, O), x.dtype),
        grid_spec=pltpu.PrefetchScalarGridSpec(
            num_scalar_prefetch=0,
            grid=grid,
            in_specs=[
                pl.BlockSpec((tm_eff, I), lambda i: (i, 0)),   # x rows (streamed)
                pl.BlockSpec((I, IH), lambda i: (0, 0)),       # phi scatter matrix (resident)
                pl.BlockSpec((1, IH), lambda i: (0, 0)),       # phi bias, flattened (resident)
                pl.BlockSpec((IH, O), lambda i: (0, 0)),       # psi weight^T (resident)
                pl.BlockSpec((1, O), lambda i: (0, 0)),        # psi bias (resident)
            ],
            out_specs=pl.BlockSpec((tm_eff, O), lambda i: (i, 0)),
        ),
        compiler_params=pltpu.CompilerParams(
            dimension_semantics=("parallel",)),
    )(x_p, S, phi_b_flat, psi_w_t, psi_b)
    return out[:B]


def reference(x, params):
    """Direct transcription of the PyTorch forward."""
    I = x.shape[1]
    phi_outputs = [
        x[:, i:i + 1] * params["phi_w"][i][None, :] + params["phi_b"][i][None, :]
        for i in range(I)
    ]
    concatenated = jnp.concatenate(phi_outputs, axis=1)              # (B, I*H)
    return jnp.dot(concatenated, params["psi_w"].T) + params["psi_b"]


if __name__ == "__main__":
    # batch, input_dim, hidden_dim, output_dim (output_dim chosen lane-dense = 128)
    B, I, H, O = 64, 8, 32, 128

    key = jax.random.PRNGKey(0)
    kx, kpw, kpb, ksw, ksb = jax.random.split(key, 5)

    x = jax.random.normal(kx, (B, I), dtype=jnp.float32)
    params = {
        # stacked per-feature Linear(1, H): weight[:, 0] and bias for each of the I phi layers
        "phi_w": jax.random.normal(kpw, (I, H), dtype=jnp.float32),
        "phi_b": jax.random.normal(kpb, (I, H), dtype=jnp.float32) * 0.1,
        # psi Linear(I*H, O)
        "psi_w": jax.random.normal(ksw, (O, I * H), dtype=jnp.float32) / jnp.sqrt(float(I * H)),
        "psi_b": jax.random.normal(ksb, (O,), dtype=jnp.float32) * 0.1,
    }

    out = kan_expert(x, params)
    out = jax.block_until_ready(out)

    ref = reference(x, params)
    assert out.shape == (B, O)
    assert jnp.allclose(out, ref, atol=1e-3, rtol=1e-3), float(jnp.max(jnp.abs(out - ref)))

    print("KERNEL_OK")
</pallas_src>

<mosaic_0001>
module attributes {stable_mosaic.version = 11 : i64} {
  func.func @kan_expert_kernel(%arg0: i32, %arg1: memref<64x8xf32, #tpu.memory_space<vmem>>, %arg2: memref<8x256xf32, #tpu.memory_space<vmem>>, %arg3: memref<1x256xf32, #tpu.memory_space<vmem>>, %arg4: memref<256x128xf32, #tpu.memory_space<vmem>>, %arg5: memref<1x128xf32, #tpu.memory_space<vmem>>, %arg6: memref<64x128xf32, #tpu.memory_space<vmem>>) attributes {dimension_semantics = [#tpu.dimension_semantics<parallel>], iteration_bounds = array<i64: 1>, scalar_prefetch = 0 : i64, scratch_operands = 0 : i64, tpu.core_type = #tpu.core_type<tc>, window_params = [{transform_indices = @transform_0, window_bounds = array<i64: 64, 8>}, {pipeline_mode = #tpu.pipeline_mode<synchronous>, transform_indices = @transform_1, window_bounds = array<i64: 8, 256>}, {pipeline_mode = #tpu.pipeline_mode<synchronous>, transform_indices = @transform_2, window_bounds = array<i64: 1, 256>}, {pipeline_mode = #tpu.pipeline_mode<synchronous>, transform_indices = @transform_3, window_bounds = array<i64: 256, 128>}, {pipeline_mode = #tpu.pipeline_mode<synchronous>, transform_indices = @transform_4, window_bounds = array<i64: 1, 128>}, {transform_indices = @transform_5, window_bounds = array<i64: 64, 128>}]} {
    %c0 = arith.constant 0 : index
    %c0_0 = arith.constant 0 : index
    %0 = vector.load %arg1[%c0, %c0_0] : memref<64x8xf32, #tpu.memory_space<vmem>>, vector<64x8xf32>
    %c0_1 = arith.constant 0 : index
    %c0_2 = arith.constant 0 : index
    %1 = vector.load %arg2[%c0_1, %c0_2] : memref<8x256xf32, #tpu.memory_space<vmem>>, vector<8x256xf32>
    %cst = arith.constant dense<0.000000e+00> : vector<64x256xf32>
    %2 = tpu.matmul %0, %1, %cst {dimension_numbers = #tpu.dot_dimension_numbers<[1], [0], [0], [1], [0, 0, 1, 1], [], []>} : vector<64x8xf32>, vector<8x256xf32>, vector<64x256xf32> -> vector<64x256xf32>
    %c0_3 = arith.constant 0 : index
    %c0_4 = arith.constant 0 : index
    %3 = vector.load %arg3[%c0_3, %c0_4] : memref<1x256xf32, #tpu.memory_space<vmem>>, vector<1x256xf32>
    %4 = vector.broadcast %3 : vector<1x256xf32> to vector<64x256xf32>
    %5 = arith.addf %2, %4 : vector<64x256xf32>
    %c0_5 = arith.constant 0 : index
    %c0_6 = arith.constant 0 : index
    %6 = vector.load %arg4[%c0_5, %c0_6] : memref<256x128xf32, #tpu.memory_space<vmem>>, vector<256x128xf32>
    %cst_7 = arith.constant dense<0.000000e+00> : vector<64x128xf32>
    %7 = tpu.matmul %5, %6, %cst_7 {dimension_numbers = #tpu.dot_dimension_numbers<[1], [0], [0], [1], [0, 0, 1, 1], [], []>} : vector<64x256xf32>, vector<256x128xf32>, vector<64x128xf32> -> vector<64x128xf32>
    %c0_8 = arith.constant 0 : index
    %c0_9 = arith.constant 0 : index
    %8 = vector.load %arg5[%c0_8, %c0_9] : memref<1x128xf32, #tpu.memory_space<vmem>>, vector<1x128xf32>
    %9 = vector.broadcast %8 : vector<1x128xf32> to vector<64x128xf32>
    %10 = arith.addf %7, %9 : vector<64x128xf32>
    %c0_10 = arith.constant 0 : index
    %c0_11 = arith.constant 0 : index
    %11 = vector.load %arg6[%c0_10, %c0_11] : memref<64x128xf32, #tpu.memory_space<vmem>>, vector<64x128xf32>
    tpu.vector_store %arg6[%c0_10, %c0_11], %10 {strides = array<i32>} : memref<64x128xf32, #tpu.memory_space<vmem>>, vector<64x128xf32>,
    return
  }
  func.func @transform_0(%arg0: i32) -> (i32, i32) {
    %c0_i32 = arith.constant 0 : i32
    %c0_i32_0 = arith.constant 0 : i32
    return %arg0, %c0_i32 : i32, i32
  }
  func.func @transform_1(%arg0: i32) -> (i32, i32) {
    %c0_i32 = arith.constant 0 : i32
    %c0_i32_0 = arith.constant 0 : i32
    %c0_i32_1 = arith.constant 0 : i32
    return %c0_i32, %c0_i32_0 : i32, i32
  }
  func.func @transform_2(%arg0: i32) -> (i32, i32) {
    %c0_i32 = arith.constant 0 : i32
    %c0_i32_0 = arith.constant 0 : i32
    %c0_i32_1 = arith.constant 0 : i32
    return %c0_i32, %c0_i32_0 : i32, i32
  }
  func.func @transform_3(%arg0: i32) -> (i32, i32) {
    %c0_i32 = arith.constant 0 : i32
    %c0_i32_0 = arith.constant 0 : i32
    %c0_i32_1 = arith.constant 0 : i32
    return %c0_i32, %c0_i32_0 : i32, i32
  }
  func.func @transform_4(%arg0: i32) -> (i32, i32) {
    %c0_i32 = arith.constant 0 : i32
    %c0_i32_0 = arith.constant 0 : i32
    %c0_i32_1 = arith.constant 0 : i32
    return %c0_i32, %c0_i32_0 : i32, i32
  }
  func.func @transform_5(%arg0: i32) -> (i32, i32) {
    %c0_i32 = arith.constant 0 : i32
    %c0_i32_0 = arith.constant 0 : i32
    return %arg0, %c0_i32 : i32, i32
  }
}

</mosaic_0001>

<llo_original>
// kernel: tpu_custom_call.1
$region0: #{tpu_custom_call.1}
  #allocation0 [shape = 'u32[]', space=smem, size = 0x4, offset = 0x4, fixed_abs, tag = 'smem constant byte address 0x4 - core index']
  #allocation1 [shape = 'u32[144,128]{1,0:T(1,128)}', space=vmem, size = 0x12000, scoped, tag = 'internal scratch']
  %s0 = inlined_call_operand.vmem [shape: f32[64,8], index: 0, kind: input, shape index: {}]
  %s1 = inlined_call_operand.vmem [shape: f32[8,256], index: 1, kind: input, shape index: {}]
  %s2 = inlined_call_operand.vmem [shape: f32[1,256], index: 2, kind: input, shape index: {}]
  %s3 = inlined_call_operand.hbm [shape: f32[256,128], index: 3, kind: input, shape index: {}]
  %s4 = inlined_call_operand.vmem [shape: f32[1,128], index: 4, kind: input, shape index: {}]
  %s5 = inlined_call_operand.hbm [shape: f32[64,128], index: 5, kind: output, shape index: {}]
  %s6 = sld [smem:[#allocation0]]
  $region34: #{tpu_custom_call.1} parent=0
    _
  %s8 = ssub.s32 1, %s6
  %s9 = scalar_select 0, %s8, %s6
  $region1: #{tpu_custom_call.1} parent=0
    #allocation2 [shape = 'u8[131072]{0}', space=vmem, size = 0x20000, scoped, tag = 'input window, operand 3, single buffered']
    #allocation3 [shape = 's32[1]{0}', space=sflag, size = 0x4, scoped, tag = 'scoped memory for tpu_custom_call.1']
    #allocation4 [shape = 's32[1]{0}', space=sflag, size = 0x4, scoped, tag = 'scoped memory for tpu_custom_call.1']
    #allocation5 [shape = 'u8[32768]{0}', space=vmem, size = 0x8000, scoped, tag = 'output window, operand 0, single buffered']
    %10 = vsyncpa [#allocation3], 0
    %11 = vsyncpa [#allocation4], 0
    // Predicated region
    $region2: #{tpu_custom_call.1} parent=1 // pred_check
      _
    $region3: #{tpu_custom_call.1} parent=1 // pred_check_branch
      %13 = sbr.rel (0) target = $region5
    $region4: #{tpu_custom_call.1} parent=1 // pred_region
      _
    $region5: #{tpu_custom_call.1} parent=1 // pred_fallthru
      _
    // Predicated region
    $region6: #{tpu_custom_call.1} parent=1 // pred_check
      _
    $region7: #{tpu_custom_call.1} parent=1 // pred_check_branch
      %15 = sbr.rel (0) target = $region9
    $region8: #{tpu_custom_call.1} parent=1 // pred_region
      _
    $region9: #{tpu_custom_call.1} parent=1 // pred_fallthru
      _
    // Predicated region
    $region10: #{tpu_custom_call.1} parent=1 // pred_check
      _
    $region11: #{tpu_custom_call.1} parent=1 // pred_check_branch
      %17 = sbr.rel (0) target = $region13
    $region12: #{tpu_custom_call.1} parent=1 // pred_region
      _
    $region13: #{tpu_custom_call.1} parent=1 // pred_fallthru
      _
    // Predicated region
    $region14: #{tpu_custom_call.1} parent=1 // pred_check
      _
    $region15: #{tpu_custom_call.1} parent=1 // pred_check_branch
      %19 = sbr.rel (0) target = $region17
    $region16: #{tpu_custom_call.1} parent=1 // pred_region
      %s21 = ssub.s32 4096, 4096
      %22 = vsyncadd [#allocation3], %s21
      %s23 = sshll.u32 [#allocation2], 4
      %s24 = int_to_ptr.vmem [resolvable:$true] %s23
      %29 = dma.hbm_to_vmem [thread:$0]  %s3, 4096, %s24, [#allocation3], 128, 128, 8
    $region17: #{tpu_custom_call.1} parent=1 // pred_fallthru
      _
    // Predicated region
    $region18: #{tpu_custom_call.1} parent=1 // pred_check
      _
    $region19: #{tpu_custom_call.1} parent=1 // pred_check_branch
      %31 = sbr.rel (0) target = $region21
    $region20: #{tpu_custom_call.1} parent=1 // pred_region
      _
    $region21: #{tpu_custom_call.1} parent=1 // pred_fallthru
      _
    // Predicated region
    $region22: #{tpu_custom_call.1} parent=1 // pred_check
      _
    $region23: #{tpu_custom_call.1} parent=1 // pred_check_branch
      %33 = sbr.rel (0) target = $region25
    $region24: #{tpu_custom_call.1} parent=1 // pred_region
      %34 = dma.done [#allocation3], 4096
    $region25: #{tpu_custom_call.1} parent=1 // pred_fallthru
      _
    %v35 = vld [vmem:[%s0] sm:$0xff]
    %v36 = vld [vmem:[%s0 + $0x8] sm:$0xff]
    %v37 = vld [vmem:[%s0 + $0x10] sm:$0xff]
    %v38 = vld [vmem:[%s0 + $0x18] sm:$0xff]
    %v39 = vld [vmem:[%s0 + $0x20] sm:$0xff]
    %v40 = vld [vmem:[%s0 + $0x28] sm:$0xff]
    %v41 = vld [vmem:[%s0 + $0x30] sm:$0xff]
    %v42 = vld [vmem:[%s0 + $0x38] sm:$0xff]
    %v43 = vld [vmem:[%s1] sm:$0xff]
    %v44 = vld [vmem:[%s1 + $0x8] sm:$0xff]
    %v45 = vld [vmem:[%s2] sm:$0x3]
    %v47 = vlaneseq
    %v48 = vshrl.u32 %v47, 7
    %v49 = vsub.s32 0, %v48
    %v50 = vrot.slane %v45, %v49
    %v51 = vlaneseq
    %v52 = vshrl.u32 %v51, 7
    %v53 = vsub.s32 1, %v52
    %v54 = vrot.slane %v45, %v53
    %vm57 = vcmask 64512
    %v59 = vsel %vm57, %v35, 0
    %v62 = vsel %vm57, %v36, 0
    %v65 = vsel %vm57, %v37, 0
    %v68 = vsel %vm57, %v38, 0
    %v71 = vsel %vm57, %v39, 0
    %v74 = vsel %vm57, %v40, 0
    %v77 = vsel %vm57, %v41, 0
    %v80 = vsel %vm57, %v42, 0
    %82 = vmatprep.subr.mxu0 %v44
    %83 = vmatpush1.msra.mxu0 %v43
    %84 = vmatprep.subr.mxu0 0.0
    %85 = vmatpush1.msra.mxu0 0.0
    %86 = vmatprep.subr.mxu0 0.0
    %87 = vmatpush1.msra.mxu0 0.0
    %88 = vmatprep.subr.mxu0 0.0
    %89 = vmatpush1.msra.mxu0 0.0
    %90 = vmatprep.subr.mxu0 0.0
    %91 = vmatpush1.msra.mxu0 0.0
    %92 = vmatprep.subr.mxu0 0.0
    %93 = vmatpush1.msra.mxu0 0.0
    %94 = vmatprep.subr.mxu0 0.0
    %95 = vmatpush1.msra.mxu0 0.0
    %96 = vmatprep.subr.mxu0 0.0
    %97 = vmatpush1.msra.mxu0 0.0
    %98 = vmatprep.subr.mxu0 0.0
    %99 = vmatpush1.msra.mxu0 0.0
    %100 = vmatprep.subr.mxu0 0.0
    %101 = vmatpush1.msra.mxu0 0.0
    %102 = vmatprep.subr.mxu0 0.0
    %103 = vmatpush1.msra.mxu0 0.0
    %104 = vmatprep.subr.mxu0 0.0
    %105 = vmatpush1.msra.mxu0 0.0
    %106 = vmatprep.subr.mxu0 0.0
    %107 = vmatpush1.msra.mxu0 0.0
    %108 = vmatprep.subr.mxu0 0.0
    %109 = vmatpush1.msra.mxu0 0.0
    %110 = vmatprep.subr.mxu0 0.0
    %111 = vmatpush1.msra.mxu0 0.0
    %112 = vmatprep.subr.mxu0 0.0
    %113 = vmatpush1.msra.mxu0 0.0
    %114 = vmatprep.subr.mxu0 0.0
    %115 = vmatpush1.msra.mxu0 0.0
    %116 = vmatprep.subr.mxu0 0.0
    %117 = vmatpush1.msra.mxu0 0.0
    %118 = vmatprep.subr.mxu0 0.0
    %119 = vmatpush1.msra.mxu0 0.0
    %120 = vmatprep.subr.mxu0 0.0
    %121 = vmatpush1.msra.mxu0 0.0
    %122 = vmatprep.subr.mxu0 0.0
    %123 = vmatpush1.msra.mxu0 0.0
    %124 = vmatprep.subr.mxu0 0.0
    %125 = vmatpush1.msra.mxu0 0.0
    %126 = vmatprep.subr.mxu0 0.0
    %127 = vmatpush1.msra.mxu0 0.0
    %128 = vmatprep.subr.mxu0 0.0
    %129 = vmatpush1.msra.mxu0 0.0
    %130 = vmatprep.subr.mxu0 0.0
    %131 = vmatpush1.msra.mxu0 0.0
    %132 = vmatprep.subr.mxu0 0.0
    %133 = vmatpush1.msra.mxu0 0.0
    %134 = vmatprep.subr.mxu0 0.0
    %135 = vmatpush1.msra.mxu0 0.0
    %136 = vmatprep.subr.mxu0 0.0
    %137 = vmatpush1.msra.mxu0 0.0
    %138 = vmatprep.subr.mxu0 0.0
    %139 = vmatpush1.msra.mxu0 0.0
    %140 = vmatprep.subr.mxu0 0.0
    %141 = vmatpush1.msra.mxu0 0.0
    %142 = vmatprep.subr.mxu0 0.0
    %143 = vmatpush1.msra.mxu0 0.0
    %144 = vmatprep.subr.mxu0 0.0
    %145 = vmatpush1.msra.mxu0 0.0
    %146 = vmatprep.mubr.f32.mxu0 0.0
    %147 = vmatmul.mubr.f32.gmra.mrb[0].mxu0 %v59
    %v148 = vpop.f32.mrb[0].mxu0
    %v149 = vadd.f32 %v50, %v148
    %v150 = vpop.f32.mrb[0].mxu0
    %v151 = vadd.f32 %v54, %v150
    %152 = vmatprep.mubr.f32.mxu0 0.0
    %153 = vmatmul.mubr.f32.gmra.mrb[0].mxu0 %v62
    %v154 = vpop.f32.mrb[0].mxu0
    %v155 = vadd.f32 %v50, %v154
    %v156 = vpop.f32.mrb[0].mxu0
    %v157 = vadd.f32 %v54, %v156
    %158 = vmatprep.mubr.f32.mxu0 0.0
    %159 = vmatmul.mubr.f32.gmra.mrb[0].mxu0 %v65
    %v160 = vpop.f32.mrb[0].mxu0
    %v161 = vadd.f32 %v50, %v160
    %v162 = vpop.f32.mrb[0].mxu0
    %v163 = vadd.f32 %v54, %v162
    %164 = vmatprep.mubr.f32.mxu0 0.0
    %165 = vmatmul.mubr.f32.gmra.mrb[0].mxu0 %v68
    %v166 = vpop.f32.mrb[0].mxu0
    %v167 = vadd.f32 %v50, %v166
    %v168 = vpop.f32.mrb[0].mxu0
    %v169 = vadd.f32 %v54, %v168
    %170 = vmatprep.mubr.f32.mxu0 0.0
    %171 = vmatmul.mubr.f32.gmra.mrb[0].mxu0 %v71
    %v172 = vpop.f32.mrb[0].mxu0
    %v173 = vadd.f32 %v50, %v172
    %v174 = vpop.f32.mrb[0].mxu0
    %v175 = vadd.f32 %v54, %v174
    %176 = vmatprep.mubr.f32.mxu0 0.0
    %177 = vmatmul.mubr.f32.gmra.mrb[0].mxu0 %v74
    %v178 = vpop.f32.mrb[0].mxu0
    %v179 = vadd.f32 %v50, %v178
    %v180 = vpop.f32.mrb[0].mxu0
    %v181 = vadd.f32 %v54, %v180
    %182 = vmatprep.mubr.f32.mxu0 0.0
    %183 = vmatmul.mubr.f32.gmra.mrb[0].mxu0 %v77
    %v184 = vpop.f32.mrb[0].mxu0
    %v185 = vadd.f32 %v50, %v184
    %v186 = vpop.f32.mrb[0].mxu0
    %v187 = vadd.f32 %v54, %v186
    %188 = vmatprep.mubr.f32.mxu0 0.0
    %189 = vmatmul.mubr.f32.gmra.mrb[0].mxu0 %v80
    %v190 = vpop.f32.mrb[0].mxu0
    %v191 = vadd.f32 %v50, %v190
    %v192 = vpop.f32.mrb[0].mxu0
    %v193 = vadd.f32 %v54, %v192
    %194 = vdwg.mxu0
    %v195 = vld [vmem:[#allocation2] sm:$0xff]
    %v196 = vld [vmem:[#allocation2 + $0x8] sm:$0xff]
    %v197 = vld [vmem:[#allocation2 + $0x10] sm:$0xff]
    %v198 = vld [vmem:[#allocation2 + $0x18] sm:$0xff]
    %v199 = vld [vmem:[#allocation2 + $0x20] sm:$0xff]
    %v200 = vld [vmem:[#allocation2 + $0x28] sm:$0xff]
    %v201 = vld [vmem:[#allocation2 + $0x30] sm:$0xff]
    %v202 = vld [vmem:[#allocation2 + $0x38] sm:$0xff]
    %v203 = vld [vmem:[#allocation2 + $0x40] sm:$0xff]
    %v204 = vld [vmem:[#allocation2 + $0x48] sm:$0xff]
    %v205 = vld [vmem:[#allocation2 + $0x50] sm:$0xff]
    %v206 = vld [vmem:[#allocation2 + $0x58] sm:$0xff]
    %v207 = vld [vmem:[#allocation2 + $0x60] sm:$0xff]
    %v208 = vld [vmem:[#allocation2 + $0x68] sm:$0xff]
    %v209 = vld [vmem:[#allocation2 + $0x70] sm:$0xff]
    %v210 = vld [vmem:[#allocation2 + $0x78] sm:$0xff]
    %v211 = vld [vmem:[#allocation2 + $0x80] sm:$0xff]
    %v212 = vld [vmem:[#allocation2 + $0x88] sm:$0xff]
    %v213 = vld [vmem:[#allocation2 + $0x90] sm:$0xff]
    %v214 = vld [vmem:[#allocation2 + $0x98] sm:$0xff]
    %v215 = vld [vmem:[#allocation2 + $0xa0] sm:$0xff]
    %v216 = vld [vmem:[#allocation2 + $0xa8] sm:$0xff]
    %v217 = vld [vmem:[#allocation2 + $0xb0] sm:$0xff]
    %v218 = vld [vmem:[#allocation2 + $0xb8] sm:$0xff]
    %v219 = vld [vmem:[#allocation2 + $0xc0] sm:$0xff]
    %v220 = vld [vmem:[#allocation2 + $0xc8] sm:$0xff]
    %v221 = vld [vmem:[#allocation2 + $0xd0] sm:$0xff]
    %v222 = vld [vmem:[#allocation2 + $0xd8] sm:$0xff]
    %v223 = vld [vmem:[#allocation2 + $0xe0] sm:$0xff]
    %v224 = vld [vmem:[#allocation2 + $0xe8] sm:$0xff]
    %v225 = vld [vmem:[#allocation2 + $0xf0] sm:$0xff]
    %v226 = vld [vmem:[#allocation2 + $0xf8] sm:$0xff]
    %v227 = vld [vmem:[%s4] sm:$0x1]
    %v229 = vlaneseq
    %v230 = vshrl.u32 %v229, 7
    %v231 = vsub.s32 0, %v230
    %v232 = vrot.slane %v227, %v231
    %234 = vmatprep.subr.mxu0 0.0
    %235 = vmatpush1.msra.mxu0 %v195
    %236 = vmatprep.subr.mxu0 0.0
    %237 = vmatpush1.msra.mxu0 %v196
    %238 = vmatprep.subr.mxu0 0.0
    %239 = vmatpush1.msra.mxu0 %v197
    %240 = vmatprep.subr.mxu0 0.0
    %241 = vmatpush1.msra.mxu0 %v198
    %242 = vmatprep.subr.mxu0 0.0
    %243 = vmatpush1.msra.mxu0 %v199
    %244 = vmatprep.subr.mxu0 0.0
    %245 = vmatpush1.msra.mxu0 %v200
    %246 = vmatprep.subr.mxu0 0.0
    %247 = vmatpush1.msra.mxu0 %v201
    %248 = vmatprep.subr.mxu0 0.0
    %249 = vmatpush1.msra.mxu0 %v202
    %250 = vmatprep.subr.mxu0 0.0
    %251 = vmatpush1.msra.mxu0 %v203
    %252 = vmatprep.subr.mxu0 0.0
    %253 = vmatpush1.msra.mxu0 %v204
    %254 = vmatprep.subr.mxu0 0.0
    %255 = vmatpush1.msra.mxu0 %v205
    %256 = vmatprep.subr.mxu0 0.0
    %257 = vmatpush1.msra.mxu0 %v206
    %258 = vmatprep.subr.mxu0 0.0
    %259 = vmatpush1.msra.mxu0 %v207
    %260 = vmatprep.subr.mxu0 0.0
    %261 = vmatpush1.msra.mxu0 %v208
    %262 = vmatprep.subr.mxu0 0.0
    %263 = vmatpush1.msra.mxu0 %v209
    %264 = vmatprep.subr.mxu0 0.0
    %265 = vmatpush1.msra.mxu0 %v210
    %266 = vmatprep.subr.mxu0 0.0
    %267 = vmatpush1.msra.mxu0 %v211
    %268 = vmatprep.subr.mxu0 0.0
    %269 = vmatpush1.msra.mxu0 %v212
    %270 = vmatprep.subr.mxu0 0.0
    %271 = vmatpush1.msra.mxu0 %v213
    %272 = vmatprep.subr.mxu0 0.0
    %273 = vmatpush1.msra.mxu0 %v214
    %274 = vmatprep.subr.mxu0 0.0
    %275 = vmatpush1.msra.mxu0 %v215
    %276 = vmatprep.subr.mxu0 0.0
    %277 = vmatpush1.msra.mxu0 %v216
    %278 = vmatprep.subr.mxu0 0.0
    %279 = vmatpush1.msra.mxu0 %v217
    %280 = vmatprep.subr.mxu0 0.0
    %281 = vmatpush1.msra.mxu0 %v218
    %282 = vmatprep.subr.mxu0 0.0
    %283 = vmatpush1.msra.mxu0 %v219
    %284 = vmatprep.subr.mxu0 0.0
    %285 = vmatpush1.msra.mxu0 %v220
    %286 = vmatprep.subr.mxu0 0.0
    %287 = vmatpush1.msra.mxu0 %v221
    %288 = vmatprep.subr.mxu0 0.0
    %289 = vmatpush1.msra.mxu0 %v222
    %290 = vmatprep.subr.mxu0 0.0
    %291 = vmatpush1.msra.mxu0 %v223
    %292 = vmatprep.subr.mxu0 0.0
    %293 = vmatpush1.msra.mxu0 %v224
    %294 = vmatprep.subr.mxu0 0.0
    %295 = vmatpush1.msra.mxu0 %v225
    %296 = vmatprep.subr.mxu0 0.0
    %297 = vmatpush1.msra.mxu0 %v226
    %298 = vmatprep.mubr.f32.mxu0 %v151
    %299 = vmatmul.mubr.f32.gmra.mrb[0].mxu0 %v149
    %v300 = vpop.f32.mrb[0].mxu0
    %v301 = vadd.f32 %v232, %v300
    %v302 = vpop.f32.mrb[0].mxu0
    %303 = vmatprep.mubr.f32.mxu0 %v157
    %304 = vmatmul.mubr.f32.gmra.mrb[0].mxu0 %v155
    %v305 = vpop.f32.mrb[0].mxu0
    %v306 = vadd.f32 %v232, %v305
    %v307 = vpop.f32.mrb[0].mxu0
    %308 = vmatprep.mubr.f32.mxu0 %v163
    %309 = vmatmul.mubr.f32.gmra.mrb[0].mxu0 %v161
    %v310 = vpop.f32.mrb[0].mxu0
    %v311 = vadd.f32 %v232, %v310
    %v312 = vpop.f32.mrb[0].mxu0
    %313 = vmatprep.mubr.f32.mxu0 %v169
    %314 = vmatmul.mubr.f32.gmra.mrb[0].mxu0 %v167
    %v315 = vpop.f32.mrb[0].mxu0
    %v316 = vadd.f32 %v232, %v315
    %v317 = vpop.f32.mrb[0].mxu0
    %318 = vmatprep.mubr.f32.mxu0 %v175
    %319 = vmatmul.mubr.f32.gmra.mrb[0].mxu0 %v173
    %v320 = vpop.f32.mrb[0].mxu0
    %v321 = vadd.f32 %v232, %v320
    %v322 = vpop.f32.mrb[0].mxu0
    %323 = vmatprep.mubr.f32.mxu0 %v181
    %324 = vmatmul.mubr.f32.gmra.mrb[0].mxu0 %v179
    %v325 = vpop.f32.mrb[0].mxu0
    %v326 = vadd.f32 %v232, %v325
    %v327 = vpop.f32.mrb[0].mxu0
    %328 = vmatprep.mubr.f32.mxu0 %v187
    %329 = vmatmul.mubr.f32.gmra.mrb[0].mxu0 %v185
    %v330 = vpop.f32.mrb[0].mxu0
    %v331 = vadd.f32 %v232, %v330
    %v332 = vpop.f32.mrb[0].mxu0
    %333 = vmatprep.mubr.f32.mxu0 %v193
    %334 = vmatmul.mubr.f32.gmra.mrb[0].mxu0 %v191
    %v335 = vpop.f32.mrb[0].mxu0
    %v336 = vadd.f32 %v232, %v335
    %v337 = vpop.f32.mrb[0].mxu0
    %338 = vdwg.mxu0
    %339 = vst [vmem:[#allocation5] sm:$0xff] %v301
    %340 = vst [vmem:[#allocation5 + $0x8] sm:$0xff] %v306
    %341 = vst [vmem:[#allocation5 + $0x10] sm:$0xff] %v311
    %342 = vst [vmem:[#allocation5 + $0x18] sm:$0xff] %v316
    %343 = vst [vmem:[#allocation5 + $0x20] sm:$0xff] %v321
    %344 = vst [vmem:[#allocation5 + $0x28] sm:$0xff] %v326
    %345 = vst [vmem:[#allocation5 + $0x30] sm:$0xff] %v331
    %346 = vst [vmem:[#allocation5 + $0x38] sm:$0xff] %v336
    // Predicated region
    $region26: #{tpu_custom_call.1} parent=1 // pred_check
      _
    $region27: #{tpu_custom_call.1} parent=1 // pred_check_branch
      %348 = sbr.rel (0) target = $region29
    $region28: #{tpu_custom_call.1} parent=1 // pred_region
      %s350 = ssub.s32 1024, 1024
      %351 = vsyncadd [#allocation4], %s350
      %s352 = sshll.u32 [#allocation5], 4
      %s353 = int_to_ptr.vmem [resolvable:$true] %s352
      %358 = dma.vmem_to_hbm [thread:$0]  %s353, 1024, %s5, [#allocation4], 128, 128, 8
    $region29: #{tpu_custom_call.1} parent=1 // pred_fallthru
      _
    // Predicated region
    $region30: #{tpu_custom_call.1} parent=1 // pred_check
      _
    $region31: #{tpu_custom_call.1} parent=1 // pred_check_branch
      %360 = sbr.rel (0) target = $region33
    $region32: #{tpu_custom_call.1} parent=1 // pred_region
      %361 = dma.done [#allocation4], 1024
    $region33: #{tpu_custom_call.1} parent=1 // pred_fallthru
      _
    %362 = vsyncpa [#allocation3], 1
    %363 = vsyncpa [#allocation4], 1

</llo_original>
